<compile_context>
chip_gen: v6e
topology: v6e:2x2x1
jax: 0.10.0
libtpu: 0.0.40
codegen_flags: <defaults>
</compile_context>

<pallas_src>
import jax
import jax.numpy as jnp
from jax.experimental import pallas as pl
from jax.experimental.pallas import tpu as pltpu

EPS = 1e-5          # nn.BatchNorm2d default
LANE = 128          # lane width
SUB = 16            # sublane multiple safe for bf16-packed tiles
TM_MAX = 512        # rows/tile: fits v7x 64 MiB VMEM comfortably; sweep up on v5e/v6e
VMEM_LIMIT = 32 * 1024 * 1024


def _pad_to(n: int, m: int) -> int:
    return ((n + m - 1) // m) * m


def _pad2d(a, rows: int, cols: int):
    r, c = a.shape
    return jnp.pad(a, ((0, rows - r), (0, cols - c)))


def _choose_tm(m_true: int) -> int:
    return min(TM_MAX, _pad_to(m_true, SUB))


# --------------------------------------------------------------------------
# Kernel 1: tiled GEMM (bf16 MXU inputs, fp32 accumulate) + per-tile BN
#           partial statistics (sum, sum of squares) per output channel.
# --------------------------------------------------------------------------
def _gemm_stats_kernel(p_ref, w_ref, o_ref, st_ref):
    acc = jnp.dot(p_ref[...], w_ref[...], preferred_element_type=jnp.float32)
    o_ref[...] = acc
    s = jnp.sum(acc, axis=0, keepdims=True)          # (1, Cp)
    ss = jnp.sum(acc * acc, axis=0, keepdims=True)   # (1, Cp)
    row = jax.lax.broadcasted_iota(jnp.int32, st_ref.shape[1:], 0)   # (8, Cp)
    stats = jnp.where(row == 0, s, jnp.where(row == 1, ss, 0.0))
    st_ref[...] = stats[None]                        # (1, 8, Cp)


def conv_gemm_stats(patches_bf16, w_bf16, tm):
    """patches: (Mp, Kp) bf16, zero-padded; w: (Kp, Cp) bf16, zero-padded."""
    Mp, Kp = patches_bf16.shape
    Cp = w_bf16.shape[1]
    nt = Mp // tm
    conv_out, stats = pl.pallas_call(
        _gemm_stats_kernel,
        out_shape=(jax.ShapeDtypeStruct((Mp, Cp), jnp.float32),
                   jax.ShapeDtypeStruct((nt, 8, Cp), jnp.float32)),
        grid_spec=pltpu.PrefetchScalarGridSpec(
            num_scalar_prefetch=0,
            grid=(nt,),
            in_specs=[pl.BlockSpec((tm, Kp), lambda i: (i, 0)),
                      pl.BlockSpec((Kp, Cp), lambda i: (0, 0))],
            out_specs=(pl.BlockSpec((tm, Cp), lambda i: (i, 0)),
                       pl.BlockSpec((1, 8, Cp), lambda i: (i, 0, 0)))),
        compiler_params=pltpu.CompilerParams(
            dimension_semantics=("parallel",),
            vmem_limit_bytes=VMEM_LIMIT),
    )(patches_bf16, w_bf16)
    return conv_out, stats


# --------------------------------------------------------------------------
# Kernel 2: per-tile BN affine apply (+ residual add) (+ ReLU), fp32 VPU math.
# --------------------------------------------------------------------------
def _make_affine_kernel(add_residual: bool, apply_relu: bool):
    def _apply(y_ref, sc_ref, sh_ref, r_ref, o_ref):
        y = y_ref[...] * sc_ref[0:1, :] + sh_ref[0:1, :]
        if r_ref is not None:
            y = y + r_ref[...]
        if apply_relu:
            y = jnp.maximum(y, 0.0)
        o_ref[...] = y.astype(o_ref.dtype)

    if add_residual:
        def kernel(y_ref, sc_ref, sh_ref, r_ref, o_ref):
            _apply(y_ref, sc_ref, sh_ref, r_ref, o_ref)
    else:
        def kernel(y_ref, sc_ref, sh_ref, o_ref):
            _apply(y_ref, sc_ref, sh_ref, None, o_ref)
    return kernel


def bn_affine_apply(y, scale, shift, tm, residual=None, relu=True):
    Mp, Cp = y.shape
    nt = Mp // tm
    sc = jnp.broadcast_to(scale[None, :], (8, Cp)).astype(jnp.float32)
    sh = jnp.broadcast_to(shift[None, :], (8, Cp)).astype(jnp.float32)
    inputs = [y, sc, sh]
    in_specs = [pl.BlockSpec((tm, Cp), lambda i: (i, 0)),
                pl.BlockSpec((8, Cp), lambda i: (0, 0)),
                pl.BlockSpec((8, Cp), lambda i: (0, 0))]
    if residual is not None:
        inputs.append(residual)
        in_specs.append(pl.BlockSpec((tm, Cp), lambda i: (i, 0)))
    kernel = _make_affine_kernel(residual is not None, relu)
    return pl.pallas_call(
        kernel,
        out_shape=jax.ShapeDtypeStruct((Mp, Cp), jnp.float32),
        grid_spec=pltpu.PrefetchScalarGridSpec(
            num_scalar_prefetch=0,
            grid=(nt,),
            in_specs=in_specs,
            out_specs=pl.BlockSpec((tm, Cp), lambda i: (i, 0))),
        compiler_params=pltpu.CompilerParams(
            dimension_semantics=("parallel",),
            vmem_limit_bytes=VMEM_LIMIT),
    )(*inputs)


# --------------------------------------------------------------------------
# Tiny plain-JAX reduction: per-tile partial sums -> BN scale/shift (exact).
# --------------------------------------------------------------------------
def _finalize_bn(stats, m_true, gamma_p, beta_p):
    s = jnp.sum(stats[:, 0, :], axis=0)              # (Cp,)
    ss = jnp.sum(stats[:, 1, :], axis=0)             # (Cp,)
    mean = s / m_true
    var = ss / m_true - mean * mean                  # biased variance (PyTorch norm path)
    inv = jax.lax.rsqrt(var + EPS)
    scale = gamma_p * inv
    shift = beta_p - mean * scale
    return scale, shift


# --------------------------------------------------------------------------
# Plain-JAX glue: im2col patch extraction (layout plumbing only, no FLOPs).
# --------------------------------------------------------------------------
def im2col(x_nhwc, ksize, stride, padding):
    N, H, W, C = x_nhwc.shape
    xp = jnp.pad(x_nhwc, ((0, 0), (padding, padding), (padding, padding), (0, 0)))
    Ho = (H + 2 * padding - ksize) // stride + 1
    Wo = (W + 2 * padding - ksize) // stride + 1
    cols = []
    for kh in range(ksize):
        for kw in range(ksize):
            patch = xp[:, kh:kh + stride * Ho:stride, kw:kw + stride * Wo:stride, :]
            cols.append(patch)                        # (N, Ho, Wo, C)
    patches = jnp.concatenate(cols, axis=-1)          # (N, Ho, Wo, k*k*C)
    return patches.reshape(N * Ho * Wo, ksize * ksize * C), (N, Ho, Wo)


# --------------------------------------------------------------------------
# One-time parameter prep (hoisted out of the forward path).
# Conv biases are dropped: constant-per-channel bias is exactly cancelled by
# the mean subtraction in training-mode BatchNorm.
# --------------------------------------------------------------------------
def prepare_params(params, in_channels, out_channels):
    cp = _pad_to(out_channels, LANE)
    k1p = _pad_to(3 * 3 * in_channels, LANE)
    k2p = _pad_to(3 * 3 * out_channels, LANE)
    ksp = _pad_to(1 * 1 * in_channels, LANE)

    def wconv(w, kp):
        cout, cin, kh, kw = w.shape
        w2d = jnp.transpose(w, (2, 3, 1, 0)).reshape(kh * kw * cin, cout)
        return _pad2d(w2d, kp, cp).astype(jnp.bfloat16)

    def pvec(v):
        return jnp.pad(v, (0, cp - v.shape[0])).astype(jnp.float32)

    prep = {
        "cout": out_channels, "cp": cp, "k1p": k1p, "k2p": k2p, "ksp": ksp,
        "w1": wconv(params["w1"], k1p), "g1": pvec(params["g1"]), "be1": pvec(params["be1"]),
        "w2": wconv(params["w2"], k2p), "g2": pvec(params["g2"]), "be2": pvec(params["be2"]),
    }
    if "ws" in params:
        prep["ws"] = wconv(params["ws"], ksp)
        prep["gs"] = pvec(params["gs"])
        prep["bes"] = pvec(params["bes"])
    return prep


# --------------------------------------------------------------------------
# BasicBlock forward (NCHW in / NCHW out, like the PyTorch module).
# --------------------------------------------------------------------------
def basic_block_forward(x_nchw, prep, stride):
    x = jnp.transpose(x_nchw, (0, 2, 3, 1))           # NCHW -> NHWC
    N, H, W, Cin = x.shape
    Cout, Cp = prep["cout"], prep["cp"]
    x_bf16 = x.astype(jnp.bfloat16)                   # MXU inputs; halves patch HBM traffic

    # ---- conv1 (3x3, stride, pad=1) + bn1 + relu -------------------------
    p1, (_, Ho, Wo) = im2col(x_bf16, 3, stride, 1)
    M = N * Ho * Wo
    tm = _choose_tm(M)
    Mp = _pad_to(M, tm)

    y1, st1 = conv_gemm_stats(_pad2d(p1, Mp, prep["k1p"]), prep["w1"], tm)
    sc1, sh1 = _finalize_bn(st1, M, prep["g1"], prep["be1"])
    out1 = bn_affine_apply(y1, sc1, sh1, tm, residual=None, relu=True)
    out1_nhwc = out1[:M, :Cout].reshape(N, Ho, Wo, Cout)

    # ---- shortcut: identity, or 1x1 conv (stride) + bn -------------------
    if stride != 1 or Cin != Cout:
        ps, _ = im2col(x_bf16, 1, stride, 0)
        ys, sts = conv_gemm_stats(_pad2d(ps, Mp, prep["ksp"]), prep["ws"], tm)
        scs, shs = _finalize_bn(sts, M, prep["gs"], prep["bes"])
        shortcut = bn_affine_apply(ys, scs, shs, tm, residual=None, relu=False)
    else:
        shortcut = _pad2d(x.reshape(M, Cin).astype(jnp.float32), Mp, Cp)

    # ---- conv2 (3x3, stride 1, pad 1) + bn2 + residual + relu (fused) ----
    p2, _ = im2col(out1_nhwc.astype(jnp.bfloat16), 3, 1, 1)
    y2, st2 = conv_gemm_stats(_pad2d(p2, Mp, prep["k2p"]), prep["w2"], tm)
    sc2, sh2 = _finalize_bn(st2, M, prep["g2"], prep["be2"])
    out2 = bn_affine_apply(y2, sc2, sh2, tm, residual=shortcut, relu=True)

    out_nhwc = out2[:M, :Cout].reshape(N, Ho, Wo, Cout)
    return jnp.transpose(out_nhwc, (0, 3, 1, 2))      # NHWC -> NCHW


# --------------------------------------------------------------------------
# Pure-JAX fp32 reference (with conv biases) for a correctness check.
# --------------------------------------------------------------------------
def _ref_conv(x, w, b, stride, pad):
    out = jax.lax.conv_general_dilated(
        x, w, (stride, stride), [(pad, pad), (pad, pad)],
        dimension_numbers=("NCHW", "OIHW", "NCHW"))
    return out + b.reshape(1, -1, 1, 1)


def _ref_bn(x, g, be):
    mean = x.mean(axis=(0, 2, 3), keepdims=True)
    var = ((x - mean) ** 2).mean(axis=(0, 2, 3), keepdims=True)
    return (x - mean) * jax.lax.rsqrt(var + EPS) * g.reshape(1, -1, 1, 1) \
        + be.reshape(1, -1, 1, 1)


def basic_block_reference(x, p, stride):
    out = jnp.maximum(_ref_bn(_ref_conv(x, p["w1"], p["b1"], stride, 1),
                              p["g1"], p["be1"]), 0.0)
    out = _ref_bn(_ref_conv(out, p["w2"], p["b2"], 1, 1), p["g2"], p["be2"])
    Cin, Cout = x.shape[1], p["w1"].shape[0]
    if stride != 1 or Cin != Cout:
        sc = _ref_bn(_ref_conv(x, p["ws"], p["bs"], stride, 0), p["gs"], p["bes"])
    else:
        sc = x
    return jnp.maximum(out + sc, 0.0)


# --------------------------------------------------------------------------
if __name__ == "__main__":
    in_channels, out_channels, stride = 4, 8, 2
    N, H, W = 2, 16, 16

    key = jax.random.PRNGKey(0)
    ks = jax.random.split(key, 8)
    f32 = jnp.float32

    params = {
        # conv1: 3x3
        "w1": 0.1 * jax.random.normal(ks[0], (out_channels, in_channels, 3, 3), f32),
        "b1": 0.1 * jax.random.normal(ks[1], (out_channels,), f32),
        "g1": jnp.ones((out_channels,), f32),
        "be1": jnp.zeros((out_channels,), f32),
        # conv2: 3x3
        "w2": 0.1 * jax.random.normal(ks[2], (out_channels, out_channels, 3, 3), f32),
        "b2": 0.1 * jax.random.normal(ks[3], (out_channels,), f32),
        "g2": jnp.ones((out_channels,), f32),
        "be2": jnp.zeros((out_channels,), f32),
        # shortcut: 1x1 conv (stride) + bn
        "ws": 0.1 * jax.random.normal(ks[4], (out_channels, in_channels, 1, 1), f32),
        "bs": 0.1 * jax.random.normal(ks[5], (out_channels,), f32),
        "gs": jnp.ones((out_channels,), f32),
        "bes": jnp.zeros((out_channels,), f32),
    }

    x = jax.random.normal(ks[6], (N, in_channels, H, W), f32)   # NCHW like PyTorch

    prep = prepare_params(params, in_channels, out_channels)    # hoisted weight prep
    fwd = jax.jit(lambda xx: basic_block_forward(xx, prep, stride))

    out = jax.block_until_ready(fwd(x))
    ref = jax.block_until_ready(basic_block_reference(x, params, stride))

    assert out.shape == ref.shape == (N, out_channels, H // stride, W // stride)
    # bf16 MXU inputs (fp32 accumulate & fp32 BN math) -> relaxed tolerance.
    assert jnp.allclose(out, ref, rtol=5e-2, atol=5e-2), "Pallas output mismatch"

    print("KERNEL_OK")
</pallas_src>

<mosaic_0001>
module attributes {stable_mosaic.version = 11 : i64} {
  func.func @_gemm_stats_kernel(%arg0: i32, %arg1: memref<128x128xbf16, #tpu.memory_space<vmem>>, %arg2: memref<128x128xbf16, #tpu.memory_space<vmem>>, %arg3: memref<128x128xf32, #tpu.memory_space<vmem>>, %arg4: memref<1x8x128xf32, #tpu.memory_space<vmem>>) attributes {dimension_semantics = [#tpu.dimension_semantics<parallel>], iteration_bounds = array<i64: 1>, scalar_prefetch = 0 : i64, scratch_operands = 0 : i64, tpu.core_type = #tpu.core_type<tc>, window_params = [{transform_indices = @transform_0, window_bounds = array<i64: 128, 128>}, {pipeline_mode = #tpu.pipeline_mode<synchronous>, transform_indices = @transform_1, window_bounds = array<i64: 128, 128>}, {transform_indices = @transform_2, window_bounds = array<i64: 128, 128>}, {transform_indices = @transform_3, window_bounds = array<i64: 1, 8, 128>}]} {
    %c0 = arith.constant 0 : index
    %c0_0 = arith.constant 0 : index
    %0 = vector.load %arg1[%c0, %c0_0] : memref<128x128xbf16, #tpu.memory_space<vmem>>, vector<128x128xbf16>
    %c0_1 = arith.constant 0 : index
    %c0_2 = arith.constant 0 : index
    %1 = vector.load %arg2[%c0_1, %c0_2] : memref<128x128xbf16, #tpu.memory_space<vmem>>, vector<128x128xbf16>
    %cst = arith.constant dense<0.000000e+00> : vector<128x128xf32>
    %2 = tpu.matmul %0, %1, %cst {dimension_numbers = #tpu.dot_dimension_numbers<[1], [0], [0], [1], [0, 0, 1, 1], [], []>} : vector<128x128xbf16>, vector<128x128xbf16>, vector<128x128xf32> -> vector<128x128xf32>
    %c0_3 = arith.constant 0 : index
    %c0_4 = arith.constant 0 : index
    %3 = vector.load %arg3[%c0_3, %c0_4] : memref<128x128xf32, #tpu.memory_space<vmem>>, vector<128x128xf32>
    tpu.vector_store %arg3[%c0_3, %c0_4], %2 {strides = array<i32>} : memref<128x128xf32, #tpu.memory_space<vmem>>, vector<128x128xf32>,
    %cst_5 = arith.constant dense<0.000000e+00> : vector<128xf32>
    %4 = vector.multi_reduction <add>, %2, %cst_5 [0] : vector<128x128xf32> to vector<128xf32>
    %5 = vector.shape_cast %4 : vector<128xf32> to vector<1x128xf32>
    %6 = arith.mulf %2, %2 : vector<128x128xf32>
    %cst_6 = arith.constant dense<0.000000e+00> : vector<128xf32>
    %7 = vector.multi_reduction <add>, %6, %cst_6 [0] : vector<128x128xf32> to vector<128xf32>
    %8 = vector.shape_cast %7 : vector<128xf32> to vector<1x128xf32>
    %9 = tpu.iota {dimensions = array<i32: 0>} : vector<8x128xi32>
    %c0_i32 = arith.constant 0 : i32
    %10 = vector.broadcast %c0_i32 : i32 to vector<8x128xi32>
    %11 = arith.cmpi eq, %9, %10 : vector<8x128xi32>
    %c1_i32 = arith.constant 1 : i32
    %12 = vector.broadcast %c1_i32 : i32 to vector<8x128xi32>
    %13 = arith.cmpi eq, %9, %12 : vector<8x128xi32>
    %cst_7 = arith.constant 0.000000e+00 : f32
    %14 = vector.shape_cast %8 : vector<1x128xf32> to vector<1x128xf32>
    %15 = vector.broadcast %14 : vector<1x128xf32> to vector<8x128xf32>
    %16 = vector.broadcast %cst_7 : f32 to vector<8x128xf32>
    %17 = arith.select %13, %15, %16 : vector<8x128xi1>, vector<8x128xf32>
    %18 = vector.shape_cast %5 : vector<1x128xf32> to vector<1x128xf32>
    %19 = vector.broadcast %18 : vector<1x128xf32> to vector<8x128xf32>
    %20 = arith.select %11, %19, %17 : vector<8x128xi1>, vector<8x128xf32>
    %21 = vector.shape_cast %20 : vector<8x128xf32> to vector<1x8x128xf32>
    %c0_8 = arith.constant 0 : index
    %c0_9 = arith.constant 0 : index
    %c0_10 = arith.constant 0 : index
    %22 = vector.load %arg4[%c0_8, %c0_9, %c0_10] : memref<1x8x128xf32, #tpu.memory_space<vmem>>, vector<1x8x128xf32>
    tpu.vector_store %arg4[%c0_8, %c0_9, %c0_10], %21 {strides = array<i32>} : memref<1x8x128xf32, #tpu.memory_space<vmem>>, vector<1x8x128xf32>,
    return
  }
  func.func @transform_0(%arg0: i32) -> (i32, i32) {
    %c0_i32 = arith.constant 0 : i32
    %c0_i32_0 = arith.constant 0 : i32
    return %arg0, %c0_i32 : i32, i32
  }
  func.func @transform_1(%arg0: i32) -> (i32, i32) {
    %c0_i32 = arith.constant 0 : i32
    %c0_i32_0 = arith.constant 0 : i32
    %c0_i32_1 = arith.constant 0 : i32
    return %c0_i32, %c0_i32_0 : i32, i32
  }
  func.func @transform_2(%arg0: i32) -> (i32, i32) {
    %c0_i32 = arith.constant 0 : i32
    %c0_i32_0 = arith.constant 0 : i32
    return %arg0, %c0_i32 : i32, i32
  }
  func.func @transform_3(%arg0: i32) -> (i32, i32, i32) {
    %c0_i32 = arith.constant 0 : i32
    %c0_i32_0 = arith.constant 0 : i32
    %c0_i32_1 = arith.constant 0 : i32
    return %arg0, %c0_i32, %c0_i32_0 : i32, i32, i32
  }
}

module attributes {stable_mosaic.version = 11 : i64} {
  func.func @kernel(%arg0: i32, %arg1: memref<128x128xf32, #tpu.memory_space<vmem>>, %arg2: memref<8x128xf32, #tpu.memory_space<vmem>>, %arg3: memref<8x128xf32, #tpu.memory_space<vmem>>, %arg4: memref<128x128xf32, #tpu.memory_space<vmem>>) attributes {dimension_semantics = [#tpu.dimension_semantics<parallel>], iteration_bounds = array<i64: 1>, scalar_prefetch = 0 : i64, scratch_operands = 0 : i64, tpu.core_type = #tpu.core_type<tc>, window_params = [{transform_indices = @transform_0, window_bounds = array<i64: 128, 128>}, {pipeline_mode = #tpu.pipeline_mode<synchronous>, transform_indices = @transform_1, window_bounds = array<i64: 8, 128>}, {pipeline_mode = #tpu.pipeline_mode<synchronous>, transform_indices = @transform_2, window_bounds = array<i64: 8, 128>}, {transform_indices = @transform_3, window_bounds = array<i64: 128, 128>}]} {
    %c0 = arith.constant 0 : index
    %c0_0 = arith.constant 0 : index
    %0 = vector.load %arg1[%c0, %c0_0] : memref<128x128xf32, #tpu.memory_space<vmem>>, vector<128x128xf32>
    %c0_1 = arith.constant 0 : index
    %c0_2 = arith.constant 0 : index
    %1 = vector.load %arg2[%c0_1, %c0_2] : memref<8x128xf32, #tpu.memory_space<vmem>>, vector<1x128xf32>
    %2 = vector.broadcast %1 : vector<1x128xf32> to vector<128x128xf32>
    %3 = arith.mulf %0, %2 : vector<128x128xf32>
    %c0_3 = arith.constant 0 : index
    %c0_4 = arith.constant 0 : index
    %4 = vector.load %arg3[%c0_3, %c0_4] : memref<8x128xf32, #tpu.memory_space<vmem>>, vector<1x128xf32>
    %5 = vector.broadcast %4 : vector<1x128xf32> to vector<128x128xf32>
    %6 = arith.addf %3, %5 : vector<128x128xf32>
    %cst = arith.constant 0.000000e+00 : f32
    %7 = vector.broadcast %cst : f32 to vector<128x128xf32>
    %8 = arith.maximumf %6, %7 : vector<128x128xf32>
    %c0_5 = arith.constant 0 : index
    %c0_6 = arith.constant 0 : index
    %9 = vector.load %arg4[%c0_5, %c0_6] : memref<128x128xf32, #tpu.memory_space<vmem>>, vector<128x128xf32>
    tpu.vector_store %arg4[%c0_5, %c0_6], %8 {strides = array<i32>} : memref<128x128xf32, #tpu.memory_space<vmem>>, vector<128x128xf32>,
    return
  }
  func.func @transform_0(%arg0: i32) -> (i32, i32) {
    %c0_i32 = arith.constant 0 : i32
    %c0_i32_0 = arith.constant 0 : i32
    return %arg0, %c0_i32 : i32, i32
  }
  func.func @transform_1(%arg0: i32) -> (i32, i32) {
    %c0_i32 = arith.constant 0 : i32
    %c0_i32_0 = arith.constant 0 : i32
    %c0_i32_1 = arith.constant 0 : i32
    return %c0_i32, %c0_i32_0 : i32, i32
  }
  func.func @transform_2(%arg0: i32) -> (i32, i32) {
    %c0_i32 = arith.constant 0 : i32
    %c0_i32_0 = arith.constant 0 : i32
    %c0_i32_1 = arith.constant 0 : i32
    return %c0_i32, %c0_i32_0 : i32, i32
  }
  func.func @transform_3(%arg0: i32) -> (i32, i32) {
    %c0_i32 = arith.constant 0 : i32
    %c0_i32_0 = arith.constant 0 : i32
    return %arg0, %c0_i32 : i32, i32
  }
}

module attributes {stable_mosaic.version = 11 : i64} {
  func.func @kernel(%arg0: i32, %arg1: memref<128x128xf32, #tpu.memory_space<vmem>>, %arg2: memref<8x128xf32, #tpu.memory_space<vmem>>, %arg3: memref<8x128xf32, #tpu.memory_space<vmem>>, %arg4: memref<128x128xf32, #tpu.memory_space<vmem>>, %arg5: memref<128x128xf32, #tpu.memory_space<vmem>>) attributes {dimension_semantics = [#tpu.dimension_semantics<parallel>], iteration_bounds = array<i64: 1>, scalar_prefetch = 0 : i64, scratch_operands = 0 : i64, tpu.core_type = #tpu.core_type<tc>, window_params = [{transform_indices = @transform_0, window_bounds = array<i64: 128, 128>}, {pipeline_mode = #tpu.pipeline_mode<synchronous>, transform_indices = @transform_1, window_bounds = array<i64: 8, 128>}, {pipeline_mode = #tpu.pipeline_mode<synchronous>, transform_indices = @transform_2, window_bounds = array<i64: 8, 128>}, {transform_indices = @transform_3, window_bounds = array<i64: 128, 128>}, {transform_indices = @transform_4, window_bounds = array<i64: 128, 128>}]} {
    %c0 = arith.constant 0 : index
    %c0_0 = arith.constant 0 : index
    %0 = vector.load %arg1[%c0, %c0_0] : memref<128x128xf32, #tpu.memory_space<vmem>>, vector<128x128xf32>
    %c0_1 = arith.constant 0 : index
    %c0_2 = arith.constant 0 : index
    %1 = vector.load %arg2[%c0_1, %c0_2] : memref<8x128xf32, #tpu.memory_space<vmem>>, vector<1x128xf32>
    %2 = vector.broadcast %1 : vector<1x128xf32> to vector<128x128xf32>
    %3 = arith.mulf %0, %2 : vector<128x128xf32>
    %c0_3 = arith.constant 0 : index
    %c0_4 = arith.constant 0 : index
    %4 = vector.load %arg3[%c0_3, %c0_4] : memref<8x128xf32, #tpu.memory_space<vmem>>, vector<1x128xf32>
    %5 = vector.broadcast %4 : vector<1x128xf32> to vector<128x128xf32>
    %6 = arith.addf %3, %5 : vector<128x128xf32>
    %c0_5 = arith.constant 0 : index
    %c0_6 = arith.constant 0 : index
    %7 = vector.load %arg4[%c0_5, %c0_6] : memref<128x128xf32, #tpu.memory_space<vmem>>, vector<128x128xf32>
    %8 = arith.addf %6, %7 : vector<128x128xf32>
    %cst = arith.constant 0.000000e+00 : f32
    %9 = vector.broadcast %cst : f32 to vector<128x128xf32>
    %10 = arith.maximumf %8, %9 : vector<128x128xf32>
    %c0_7 = arith.constant 0 : index
    %c0_8 = arith.constant 0 : index
    %11 = vector.load %arg5[%c0_7, %c0_8] : memref<128x128xf32, #tpu.memory_space<vmem>>, vector<128x128xf32>
    tpu.vector_store %arg5[%c0_7, %c0_8], %10 {strides = array<i32>} : memref<128x128xf32, #tpu.memory_space<vmem>>, vector<128x128xf32>,
    return
  }
  func.func @transform_0(%arg0: i32) -> (i32, i32) {
    %c0_i32 = arith.constant 0 : i32
    %c0_i32_0 = arith.constant 0 : i32
    return %arg0, %c0_i32 : i32, i32
  }
  func.func @transform_1(%arg0: i32) -> (i32, i32) {
    %c0_i32 = arith.constant 0 : i32
    %c0_i32_0 = arith.constant 0 : i32
    %c0_i32_1 = arith.constant 0 : i32
    return %c0_i32, %c0_i32_0 : i32, i32
  }
  func.func @transform_2(%arg0: i32) -> (i32, i32) {
    %c0_i32 = arith.constant 0 : i32
    %c0_i32_0 = arith.constant 0 : i32
    %c0_i32_1 = arith.constant 0 : i32
    return %c0_i32, %c0_i32_0 : i32, i32
  }
  func.func @transform_3(%arg0: i32) -> (i32, i32) {
    %c0_i32 = arith.constant 0 : i32
    %c0_i32_0 = arith.constant 0 : i32
    return %arg0, %c0_i32 : i32, i32
  }
  func.func @transform_4(%arg0: i32) -> (i32, i32) {
    %c0_i32 = arith.constant 0 : i32
    %c0_i32_0 = arith.constant 0 : i32
    return %arg0, %c0_i32 : i32, i32
  }
}

module attributes {stable_mosaic.version = 11 : i64} {
  func.func @kernel(%arg0: i32, %arg1: memref<128x128xf32, #tpu.memory_space<vmem>>, %arg2: memref<8x128xf32, #tpu.memory_space<vmem>>, %arg3: memref<8x128xf32, #tpu.memory_space<vmem>>, %arg4: memref<128x128xf32, #tpu.memory_space<vmem>>) attributes {dimension_semantics = [#tpu.dimension_semantics<parallel>], iteration_bounds = array<i64: 1>, scalar_prefetch = 0 : i64, scratch_operands = 0 : i64, tpu.core_type = #tpu.core_type<tc>, window_params = [{transform_indices = @transform_0, window_bounds = array<i64: 128, 128>}, {pipeline_mode = #tpu.pipeline_mode<synchronous>, transform_indices = @transform_1, window_bounds = array<i64: 8, 128>}, {pipeline_mode = #tpu.pipeline_mode<synchronous>, transform_indices = @transform_2, window_bounds = array<i64: 8, 128>}, {transform_indices = @transform_3, window_bounds = array<i64: 128, 128>}]} {
    %c0 = arith.constant 0 : index
    %c0_0 = arith.constant 0 : index
    %0 = vector.load %arg1[%c0, %c0_0] : memref<128x128xf32, #tpu.memory_space<vmem>>, vector<128x128xf32>
    %c0_1 = arith.constant 0 : index
    %c0_2 = arith.constant 0 : index
    %1 = vector.load %arg2[%c0_1, %c0_2] : memref<8x128xf32, #tpu.memory_space<vmem>>, vector<1x128xf32>
    %2 = vector.broadcast %1 : vector<1x128xf32> to vector<128x128xf32>
    %3 = arith.mulf %0, %2 : vector<128x128xf32>
    %c0_3 = arith.constant 0 : index
    %c0_4 = arith.constant 0 : index
    %4 = vector.load %arg3[%c0_3, %c0_4] : memref<8x128xf32, #tpu.memory_space<vmem>>, vector<1x128xf32>
    %5 = vector.broadcast %4 : vector<1x128xf32> to vector<128x128xf32>
    %6 = arith.addf %3, %5 : vector<128x128xf32>
    %c0_5 = arith.constant 0 : index
    %c0_6 = arith.constant 0 : index
    %7 = vector.load %arg4[%c0_5, %c0_6] : memref<128x128xf32, #tpu.memory_space<vmem>>, vector<128x128xf32>
    tpu.vector_store %arg4[%c0_5, %c0_6], %6 {strides = array<i32>} : memref<128x128xf32, #tpu.memory_space<vmem>>, vector<128x128xf32>,
    return
  }
  func.func @transform_0(%arg0: i32) -> (i32, i32) {
    %c0_i32 = arith.constant 0 : i32
    %c0_i32_0 = arith.constant 0 : i32
    return %arg0, %c0_i32 : i32, i32
  }
  func.func @transform_1(%arg0: i32) -> (i32, i32) {
    %c0_i32 = arith.constant 0 : i32
    %c0_i32_0 = arith.constant 0 : i32
    %c0_i32_1 = arith.constant 0 : i32
    return %c0_i32, %c0_i32_0 : i32, i32
  }
  func.func @transform_2(%arg0: i32) -> (i32, i32) {
    %c0_i32 = arith.constant 0 : i32
    %c0_i32_0 = arith.constant 0 : i32
    %c0_i32_1 = arith.constant 0 : i32
    return %c0_i32, %c0_i32_0 : i32, i32
  }
  func.func @transform_3(%arg0: i32) -> (i32, i32) {
    %c0_i32 = arith.constant 0 : i32
    %c0_i32_0 = arith.constant 0 : i32
    return %arg0, %c0_i32 : i32, i32
  }
}

</mosaic_0001>

<llo_original>
// kernel: _lambda_.7
$region0: #{_lambda_.7}
  #allocation0 [shape = 'u32[]', space=smem, size = 0x4, offset = 0x4, fixed_abs, tag = 'smem constant byte address 0x4 - core index']
  #allocation1 [shape = 'u32[144,128]{1,0:T(1,128)}', space=vmem, size = 0x12000, scoped, tag = 'internal scratch']
  %s0 = inlined_call_operand.vmem [shape: f32[128,128], index: 0, kind: input, shape index: {}]
  %s1 = inlined_call_operand.vmem [shape: f32[8,128], index: 1, kind: input, shape index: {}]
  %s2 = inlined_call_operand.vmem [shape: f32[8,128], index: 2, kind: input, shape index: {}]
  %s3 = inlined_call_operand.vmem [shape: f32[128,128], index: 3, kind: output, shape index: {}]
  %s4 = sld [smem:[#allocation0]]
  $region22: #{_lambda_.7} parent=0
    _
  %s6 = ssub.s32 1, %s4
  %s7 = scalar_select 0, %s6, %s4
  // Predicated region
  $region2: #{_lambda_.7} parent=0 // pred_check
    _
  $region3: #{_lambda_.7} parent=0 // pred_check_branch
    %9 = sbr.rel (0) target = $region5
  $region4: #{_lambda_.7} parent=0 // pred_region
    _
  $region5: #{_lambda_.7} parent=0 // pred_fallthru
    _
  // Predicated region
  $region6: #{_lambda_.7} parent=0 // pred_check
    _
  $region7: #{_lambda_.7} parent=0 // pred_check_branch
    %11 = sbr.rel (0) target = $region9
  $region8: #{_lambda_.7} parent=0 // pred_region
    _
  $region9: #{_lambda_.7} parent=0 // pred_fallthru
    _
  // Predicated region
  $region10: #{_lambda_.7} parent=0 // pred_check
    _
  $region11: #{_lambda_.7} parent=0 // pred_check_branch
    %13 = sbr.rel (0) target = $region13
  $region12: #{_lambda_.7} parent=0 // pred_region
    _
  $region13: #{_lambda_.7} parent=0 // pred_fallthru
    _
  %v14 = vld [vmem:[%s0] sm:$0xff]
  %v15 = vld [vmem:[%s0 + $0x8] sm:$0xff]
  %v16 = vld [vmem:[%s0 + $0x10] sm:$0xff]
  %v17 = vld [vmem:[%s0 + $0x18] sm:$0xff]
  %v18 = vld [vmem:[%s0 + $0x20] sm:$0xff]
  %v19 = vld [vmem:[%s0 + $0x28] sm:$0xff]
  %v20 = vld [vmem:[%s0 + $0x30] sm:$0xff]
  %v21 = vld [vmem:[%s0 + $0x38] sm:$0xff]
  %v22 = vld [vmem:[%s0 + $0x40] sm:$0xff]
  %v23 = vld [vmem:[%s0 + $0x48] sm:$0xff]
  %v24 = vld [vmem:[%s0 + $0x50] sm:$0xff]
  %v25 = vld [vmem:[%s0 + $0x58] sm:$0xff]
  %v26 = vld [vmem:[%s0 + $0x60] sm:$0xff]
  %v27 = vld [vmem:[%s0 + $0x68] sm:$0xff]
  %v28 = vld [vmem:[%s0 + $0x70] sm:$0xff]
  %v29 = vld [vmem:[%s0 + $0x78] sm:$0xff]
  %v30 = vld [vmem:[%s1] sm:$0x1]
  %v31 = vlaneseq
  %v32 = vshrl.u32 %v31, 7
  %v33 = vsub.s32 0, %v32
  %v34 = vrot.slane %v30, %v33
  %v35 = vmul.f32 %v14, %v34
  %v36 = vmul.f32 %v15, %v34
  %v37 = vmul.f32 %v16, %v34
  %v38 = vmul.f32 %v17, %v34
  %v39 = vmul.f32 %v18, %v34
  %v40 = vmul.f32 %v19, %v34
  %v41 = vmul.f32 %v20, %v34
  %v42 = vmul.f32 %v21, %v34
  %v43 = vmul.f32 %v22, %v34
  %v44 = vmul.f32 %v23, %v34
  %v45 = vmul.f32 %v24, %v34
  %v46 = vmul.f32 %v25, %v34
  %v47 = vmul.f32 %v26, %v34
  %v48 = vmul.f32 %v27, %v34
  %v49 = vmul.f32 %v28, %v34
  %v50 = vmul.f32 %v29, %v34
  %v51 = vld [vmem:[%s2] sm:$0x1]
  %v52 = vlaneseq
  %v53 = vshrl.u32 %v52, 7
  %v54 = vsub.s32 0, %v53
  %v55 = vrot.slane %v51, %v54
  %v56 = vadd.f32 %v35, %v55
  %v57 = vadd.f32 %v36, %v55
  %v58 = vadd.f32 %v37, %v55
  %v59 = vadd.f32 %v38, %v55
  %v60 = vadd.f32 %v39, %v55
  %v61 = vadd.f32 %v40, %v55
  %v62 = vadd.f32 %v41, %v55
  %v63 = vadd.f32 %v42, %v55
  %v64 = vadd.f32 %v43, %v55
  %v65 = vadd.f32 %v44, %v55
  %v66 = vadd.f32 %v45, %v55
  %v67 = vadd.f32 %v46, %v55
  %v68 = vadd.f32 %v47, %v55
  %v69 = vadd.f32 %v48, %v55
  %v70 = vadd.f32 %v49, %v55
  %v71 = vadd.f32 %v50, %v55
  %v72 = vmax.f32 %v56, 0.0
  %v73 = vmax.f32 %v57, 0.0
  %v74 = vmax.f32 %v58, 0.0
  %v75 = vmax.f32 %v59, 0.0
  %v76 = vmax.f32 %v60, 0.0
  %v77 = vmax.f32 %v61, 0.0
  %v78 = vmax.f32 %v62, 0.0
  %v79 = vmax.f32 %v63, 0.0
  %v80 = vmax.f32 %v64, 0.0
  %v81 = vmax.f32 %v65, 0.0
  %v82 = vmax.f32 %v66, 0.0
  %v83 = vmax.f32 %v67, 0.0
  %v84 = vmax.f32 %v68, 0.0
  %v85 = vmax.f32 %v69, 0.0
  %v86 = vmax.f32 %v70, 0.0
  %v87 = vmax.f32 %v71, 0.0
  %88 = vst [vmem:[%s3] sm:$0xff] %v72
  %89 = vst [vmem:[%s3 + $0x8] sm:$0xff] %v73
  %90 = vst [vmem:[%s3 + $0x10] sm:$0xff] %v74
  %91 = vst [vmem:[%s3 + $0x18] sm:$0xff] %v75
  %92 = vst [vmem:[%s3 + $0x20] sm:$0xff] %v76
  %93 = vst [vmem:[%s3 + $0x28] sm:$0xff] %v77
  %94 = vst [vmem:[%s3 + $0x30] sm:$0xff] %v78
  %95 = vst [vmem:[%s3 + $0x38] sm:$0xff] %v79
  %96 = vst [vmem:[%s3 + $0x40] sm:$0xff] %v80
  %97 = vst [vmem:[%s3 + $0x48] sm:$0xff] %v81
  %98 = vst [vmem:[%s3 + $0x50] sm:$0xff] %v82
  %99 = vst [vmem:[%s3 + $0x58] sm:$0xff] %v83
  %100 = vst [vmem:[%s3 + $0x60] sm:$0xff] %v84
  %101 = vst [vmem:[%s3 + $0x68] sm:$0xff] %v85
  %102 = vst [vmem:[%s3 + $0x70] sm:$0xff] %v86
  %103 = vst [vmem:[%s3 + $0x78] sm:$0xff] %v87
  // Predicated region
  $region14: #{_lambda_.7} parent=0 // pred_check
    _
  $region15: #{_lambda_.7} parent=0 // pred_check_branch
    %105 = sbr.rel (0) target = $region17
  $region16: #{_lambda_.7} parent=0 // pred_region
    _
  $region17: #{_lambda_.7} parent=0 // pred_fallthru
    _
  // Predicated region
  $region18: #{_lambda_.7} parent=0 // pred_check
    _
  $region19: #{_lambda_.7} parent=0 // pred_check_branch
    %107 = sbr.rel (0) target = $region21
  $region20: #{_lambda_.7} parent=0 // pred_region
    _
  $region21: #{_lambda_.7} parent=0 // pred_fallthru
    _

// kernel: _lambda_.6
$region0: #{_lambda_.6}
  #allocation0 [shape = 'u32[]', space=smem, size = 0x4, offset = 0x4, fixed_abs, tag = 'smem constant byte address 0x4 - core index']
  #allocation1 [shape = 'u32[144,128]{1,0:T(1,128)}', space=vmem, size = 0x12000, scoped, tag = 'internal scratch']
  %s0 = inlined_call_operand.vmem [shape: bf16[128,128], index: 0, kind: input, shape index: {}]
  %s1 = inlined_call_operand.vmem [shape: bf16[128,128], index: 1, kind: input, shape index: {}]
  %s2 = inlined_call_operand.vmem [shape: f32[128,128], index: 2, kind: output, shape index: {0}]
  %s3 = inlined_call_operand.vmem [shape: f32[1,8,128], index: 3, kind: output, shape index: {1}]
  %4 = xla_tuple %s2, %s3
  %s5 = sld [smem:[#allocation0]]
  $region26: #{_lambda_.6} parent=0
    _
  %s7 = ssub.s32 1, %s5
  %s8 = scalar_select 0, %s7, %s5
  // Predicated region
  $region2: #{_lambda_.6} parent=0 // pred_check
    _
  $region3: #{_lambda_.6} parent=0 // pred_check_branch
    %10 = sbr.rel (0) target = $region5
  $region4: #{_lambda_.6} parent=0 // pred_region
    _
  $region5: #{_lambda_.6} parent=0 // pred_fallthru
    _
  // Predicated region
  $region6: #{_lambda_.6} parent=0 // pred_check
    _
  $region7: #{_lambda_.6} parent=0 // pred_check_branch
    %12 = sbr.rel (0) target = $region9
  $region8: #{_lambda_.6} parent=0 // pred_region
    _
  $region9: #{_lambda_.6} parent=0 // pred_fallthru
    _
  %v14 = vld [vmem:[%s0] sm:$0xf]
  %v15 = vld [vmem:[%s0 + $0x4] sm:$0xf]
  %v16 = vld [vmem:[%s0 + $0x8] sm:$0xf]
  %v17 = vld [vmem:[%s0 + $0xc] sm:$0xf]
  %v18 = vld [vmem:[%s0 + $0x10] sm:$0xf]
  %v19 = vld [vmem:[%s0 + $0x14] sm:$0xf]
  %v20 = vld [vmem:[%s0 + $0x18] sm:$0xf]
  %v21 = vld [vmem:[%s0 + $0x1c] sm:$0xf]
  %v22 = vld [vmem:[%s0 + $0x20] sm:$0xf]
  %v23 = vld [vmem:[%s0 + $0x24] sm:$0xf]
  %v24 = vld [vmem:[%s0 + $0x28] sm:$0xf]
  %v25 = vld [vmem:[%s0 + $0x2c] sm:$0xf]
  %v26 = vld [vmem:[%s0 + $0x30] sm:$0xf]
  %v27 = vld [vmem:[%s0 + $0x34] sm:$0xf]
  %v28 = vld [vmem:[%s0 + $0x38] sm:$0xf]
  %v29 = vld [vmem:[%s0 + $0x3c] sm:$0xf]
  %v30 = vld [vmem:[%s1] sm:$0xf]
  %v31 = vld [vmem:[%s1 + $0x4] sm:$0xf]
  %v32 = vld [vmem:[%s1 + $0x8] sm:$0xf]
  %v33 = vld [vmem:[%s1 + $0xc] sm:$0xf]
  %v34 = vld [vmem:[%s1 + $0x10] sm:$0xf]
  %v35 = vld [vmem:[%s1 + $0x14] sm:$0xf]
  %v36 = vld [vmem:[%s1 + $0x18] sm:$0xf]
  %v37 = vld [vmem:[%s1 + $0x1c] sm:$0xf]
  %v38 = vld [vmem:[%s1 + $0x20] sm:$0xf]
  %v39 = vld [vmem:[%s1 + $0x24] sm:$0xf]
  %v40 = vld [vmem:[%s1 + $0x28] sm:$0xf]
  %v41 = vld [vmem:[%s1 + $0x2c] sm:$0xf]
  %v42 = vld [vmem:[%s1 + $0x30] sm:$0xf]
  %v43 = vld [vmem:[%s1 + $0x34] sm:$0xf]
  %v44 = vld [vmem:[%s1 + $0x38] sm:$0xf]
  %v45 = vld [vmem:[%s1 + $0x3c] sm:$0xf]
  %v62 = vunpack.c.l.b16 %v14
  %v63 = vunpack.c.l.b16 %v15
  %v64 = vunpack.c.l.b16 %v16
  %v65 = vunpack.c.l.b16 %v17
  %v66 = vunpack.c.l.b16 %v18
  %v67 = vunpack.c.l.b16 %v19
  %v68 = vunpack.c.l.b16 %v20
  %v69 = vunpack.c.l.b16 %v21
  %v70 = vunpack.c.l.b16 %v22
  %v71 = vunpack.c.l.b16 %v23
  %v72 = vunpack.c.l.b16 %v24
  %v73 = vunpack.c.l.b16 %v25
  %v74 = vunpack.c.l.b16 %v26
  %v75 = vunpack.c.l.b16 %v27
  %v76 = vunpack.c.l.b16 %v28
  %v77 = vunpack.c.l.b16 %v29
  %v78 = vpack.c.b16 %v63, %v62
  %v79 = vpack.c.b16 %v65, %v64
  %v80 = vpack.c.b16 %v67, %v66
  %v81 = vpack.c.b16 %v69, %v68
  %v82 = vpack.c.b16 %v71, %v70
  %v83 = vpack.c.b16 %v73, %v72
  %v84 = vpack.c.b16 %v75, %v74
  %v85 = vpack.c.b16 %v77, %v76
  %v110 = vunpack.c.l.b16 %v30
  %v111 = vunpack.c.l.b16 %v31
  %v112 = vunpack.c.l.b16 %v32
  %v113 = vunpack.c.l.b16 %v33
  %v114 = vunpack.c.l.b16 %v34
  %v115 = vunpack.c.l.b16 %v35
  %v116 = vunpack.c.l.b16 %v36
  %v117 = vunpack.c.l.b16 %v37
  %v118 = vunpack.c.l.b16 %v38
  %v119 = vunpack.c.l.b16 %v39
  %v120 = vunpack.c.l.b16 %v40
  %v121 = vunpack.c.l.b16 %v41
  %v122 = vunpack.c.l.b16 %v42
  %v123 = vunpack.c.l.b16 %v43
  %v124 = vunpack.c.l.b16 %v44
  %v125 = vunpack.c.l.b16 %v45
  %v126 = vpack.c.b16 %v111, %v110
  %v127 = vpack.c.b16 %v113, %v112
  %v128 = vpack.c.b16 %v115, %v114
  %v129 = vpack.c.b16 %v117, %v116
  %v130 = vpack.c.b16 %v119, %v118
  %v131 = vpack.c.b16 %v121, %v120
  %v132 = vpack.c.b16 %v123, %v122
  %v133 = vpack.c.b16 %v125, %v124
  %142 = vmatprep.subr.bf16.mxu0 0
  %143 = vmatpush1.bf16.msra.mxu0 %v133
  %144 = vmatprep.subr.bf16.mxu0 0
  %145 = vmatpush1.bf16.msra.mxu0 %v132
  %146 = vmatprep.subr.bf16.mxu0 0
  %147 = vmatpush1.bf16.msra.mxu0 %v131
  %148 = vmatprep.subr.bf16.mxu0 0
  %149 = vmatpush1.bf16.msra.mxu0 %v130
  %150 = vmatprep.subr.bf16.mxu0 0
  %151 = vmatpush1.bf16.msra.mxu0 %v129
  %152 = vmatprep.subr.bf16.mxu0 0
  %153 = vmatpush1.bf16.msra.mxu0 %v128
  %154 = vmatprep.subr.bf16.mxu0 0
  %155 = vmatpush1.bf16.msra.mxu0 %v127
  %156 = vmatprep.subr.bf16.mxu0 0
  %157 = vmatpush1.bf16.msra.mxu0 %v126
  %158 = vmatprep.subr.bf16.mxu0 0
  %159 = vmatpush2.bf16.msra.mxu0 0
  %160 = vmatprep.subr.bf16.mxu0 0
  %161 = vmatpush2.bf16.msra.mxu0 0
  %162 = vmatprep.subr.bf16.mxu0 0
  %163 = vmatpush2.bf16.msra.mxu0 0
  %164 = vmatprep.subr.bf16.mxu0 0
  %165 = vmatpush2.bf16.msra.mxu0 0
  %166 = vmatprep.subr.bf16.mxu0 0
  %167 = vmatpush2.bf16.msra.mxu0 0
  %168 = vmatprep.subr.bf16.mxu0 0
  %169 = vmatpush2.bf16.msra.mxu0 0
  %170 = vmatprep.subr.bf16.mxu0 0
  %171 = vmatpush2.bf16.msra.mxu0 0
  %172 = vmatprep.subr.bf16.mxu0 0
  %173 = vmatpush2.bf16.msra.mxu0 0
  %174 = vmatprep.mubr.bf16.mxu0 0
  %175 = vmatmul.mubr.bf16.gmra.mxu0 %v78
  %v176 = vpop.f32.mrf.mxu0
  %v177 = vadd.f32 0.0, %v176
  %v178 = vpop.f32.mrf.mxu0
  %v179 = vpop.f32.mrf.mxu0
  %v180 = vadd.f32 0.0, %v179
  %v181 = vpop.f32.mrf.mxu0
  %182 = vmatprep.mubr.bf16.mxu0 0
  %183 = vmatmul.mubr.bf16.gmra.mxu0 %v79
  %v184 = vpop.f32.mrf.mxu0
  %v185 = vadd.f32 0.0, %v184
  %v186 = vpop.f32.mrf.mxu0
  %v187 = vpop.f32.mrf.mxu0
  %v188 = vadd.f32 0.0, %v187
  %v189 = vpop.f32.mrf.mxu0
  %190 = vmatprep.mubr.bf16.mxu0 0
  %191 = vmatmul.mubr.bf16.gmra.mxu0 %v80
  %v192 = vpop.f32.mrf.mxu0
  %v193 = vadd.f32 0.0, %v192
  %v194 = vpop.f32.mrf.mxu0
  %v195 = vpop.f32.mrf.mxu0
  %v196 = vadd.f32 0.0, %v195
  %v197 = vpop.f32.mrf.mxu0
  %198 = vmatprep.mubr.bf16.mxu0 0
  %199 = vmatmul.mubr.bf16.gmra.mxu0 %v81
  %v200 = vpop.f32.mrf.mxu0
  %v201 = vadd.f32 0.0, %v200
  %v202 = vpop.f32.mrf.mxu0
  %v203 = vpop.f32.mrf.mxu0
  %v204 = vadd.f32 0.0, %v203
  %v205 = vpop.f32.mrf.mxu0
  %206 = vmatprep.mubr.bf16.mxu0 0
  %207 = vmatmul.mubr.bf16.gmra.mxu0 %v82
  %v208 = vpop.f32.mrf.mxu0
  %v209 = vadd.f32 0.0, %v208
  %v210 = vpop.f32.mrf.mxu0
  %v211 = vpop.f32.mrf.mxu0
  %v212 = vadd.f32 0.0, %v211
  %v213 = vpop.f32.mrf.mxu0
  %214 = vmatprep.mubr.bf16.mxu0 0
  %215 = vmatmul.mubr.bf16.gmra.mxu0 %v83
  %v216 = vpop.f32.mrf.mxu0
  %v217 = vadd.f32 0.0, %v216
  %v218 = vpop.f32.mrf.mxu0
  %v219 = vpop.f32.mrf.mxu0
  %v220 = vadd.f32 0.0, %v219
  %v221 = vpop.f32.mrf.mxu0
  %222 = vmatprep.mubr.bf16.mxu0 0
  %223 = vmatmul.mubr.bf16.gmra.mxu0 %v84
  %v224 = vpop.f32.mrf.mxu0
  %v225 = vadd.f32 0.0, %v224
  %v226 = vpop.f32.mrf.mxu0
  %v227 = vpop.f32.mrf.mxu0
  %v228 = vadd.f32 0.0, %v227
  %v229 = vpop.f32.mrf.mxu0
  %230 = vmatprep.mubr.bf16.mxu0 0
  %231 = vmatmul.mubr.bf16.gmra.mxu0 %v85
  %v232 = vpop.f32.mrf.mxu0
  %v233 = vadd.f32 0.0, %v232
  %v234 = vpop.f32.mrf.mxu0
  %v235 = vpop.f32.mrf.mxu0
  %v236 = vadd.f32 0.0, %v235
  %v237 = vpop.f32.mrf.mxu0
  %238 = vdwg.mxu0
  %239 = vst [vmem:[%s2] sm:$0xff] %v177
  %240 = vst [vmem:[%s2 + $0x8] sm:$0xff] %v180
  %241 = vst [vmem:[%s2 + $0x10] sm:$0xff] %v185
  %242 = vst [vmem:[%s2 + $0x18] sm:$0xff] %v188
  %243 = vst [vmem:[%s2 + $0x20] sm:$0xff] %v193
  %244 = vst [vmem:[%s2 + $0x28] sm:$0xff] %v196
  %245 = vst [vmem:[%s2 + $0x30] sm:$0xff] %v201
  %246 = vst [vmem:[%s2 + $0x38] sm:$0xff] %v204
  %247 = vst [vmem:[%s2 + $0x40] sm:$0xff] %v209
  %248 = vst [vmem:[%s2 + $0x48] sm:$0xff] %v212
  %249 = vst [vmem:[%s2 + $0x50] sm:$0xff] %v217
  %250 = vst [vmem:[%s2 + $0x58] sm:$0xff] %v220
  %251 = vst [vmem:[%s2 + $0x60] sm:$0xff] %v225
  %252 = vst [vmem:[%s2 + $0x68] sm:$0xff] %v228
  %253 = vst [vmem:[%s2 + $0x70] sm:$0xff] %v233
  %254 = vst [vmem:[%s2 + $0x78] sm:$0xff] %v236
  %v255 = vadd.f32 %v177, %v180
  %v256 = vadd.f32 %v255, %v185
  %v257 = vadd.f32 %v256, %v188
  %v258 = vadd.f32 %v257, %v193
  %v259 = vadd.f32 %v258, %v196
  %v260 = vadd.f32 %v259, %v201
  %v261 = vadd.f32 %v260, %v204
  %v262 = vadd.f32 %v261, %v209
  %v263 = vadd.f32 %v262, %v212
  %v264 = vadd.f32 %v263, %v217
  %v265 = vadd.f32 %v264, %v220
  %v266 = vadd.f32 %v265, %v225
  %v267 = vadd.f32 %v266, %v228
  %v268 = vadd.f32 %v267, %v233
  %v269 = vadd.f32 %v268, %v236
  %v270 = vrot.slane %v269, 4
  %v271 = vadd.f32 %v269, %v270
  %v272 = vrot.slane %v271, 2
  %v273 = vadd.f32 %v271, %v272
  %v274 = vrot.slane %v273, 1
  %v275 = vadd.f32 %v273, %v274
  %v276 = vmul.f32 %v177, %v177
  %v277 = vmul.f32 %v180, %v180
  %v278 = vmul.f32 %v185, %v185
  %v279 = vmul.f32 %v188, %v188
  %v280 = vmul.f32 %v193, %v193
  %v281 = vmul.f32 %v196, %v196
  %v282 = vmul.f32 %v201, %v201
  %v283 = vmul.f32 %v204, %v204
  %v284 = vmul.f32 %v209, %v209
  %v285 = vmul.f32 %v212, %v212
  %v286 = vmul.f32 %v217, %v217
  %v287 = vmul.f32 %v220, %v220
  %v288 = vmul.f32 %v225, %v225
  %v289 = vmul.f32 %v228, %v228
  %v290 = vmul.f32 %v233, %v233
  %v291 = vmul.f32 %v236, %v236
  %v292 = vadd.f32 %v276, %v277
  %v293 = vadd.f32 %v292, %v278
  %v294 = vadd.f32 %v293, %v279
  %v295 = vadd.f32 %v294, %v280
  %v296 = vadd.f32 %v295, %v281
  %v297 = vadd.f32 %v296, %v282
  %v298 = vadd.f32 %v297, %v283
  %v299 = vadd.f32 %v298, %v284
  %v300 = vadd.f32 %v299, %v285
  %v301 = vadd.f32 %v300, %v286
  %v302 = vadd.f32 %v301, %v287
  %v303 = vadd.f32 %v302, %v288
  %v304 = vadd.f32 %v303, %v289
  %v305 = vadd.f32 %v304, %v290
  %v306 = vadd.f32 %v305, %v291
  %v307 = vrot.slane %v306, 4
  %v308 = vadd.f32 %v306, %v307
  %v309 = vrot.slane %v308, 2
  %v310 = vadd.f32 %v308, %v309
  %v311 = vrot.slane %v310, 1
  %v312 = vadd.f32 %v310, %v311
  %v313 = vlaneseq
  %v314 = vshrl.u32 %v313, 7
  %vm315 = vcmp.eq.s32.totalorder %v314, 0
  %vm316 = vcmp.eq.s32.totalorder %v314, 1
  %v317 = vsel %vm316, %v312, 0.0
  %v318 = vsel %vm315, %v275, %v317
  %319 = vst [vmem:[%s3] sm:$0xff] %v318
  // Predicated region
  $region10: #{_lambda_.6} parent=0 // pred_check
    _
  $region11: #{_lambda_.6} parent=0 // pred_check_branch
    %321 = sbr.rel (0) target = $region13
  $region12: #{_lambda_.6} parent=0 // pred_region
    _
  $region13: #{_lambda_.6} parent=0 // pred_fallthru
    _
  // Predicated region
  $region14: #{_lambda_.6} parent=0 // pred_check
    _
  $region15: #{_lambda_.6} parent=0 // pred_check_branch
    %323 = sbr.rel (0) target = $region17
  $region16: #{_lambda_.6} parent=0 // pred_region
    _
  $region17: #{_lambda_.6} parent=0 // pred_fallthru
    _
  // Predicated region
  $region18: #{_lambda_.6} parent=0 // pred_check
    _
  $region19: #{_lambda_.6} parent=0 // pred_check_branch
    %325 = sbr.rel (0) target = $region21
  $region20: #{_lambda_.6} parent=0 // pred_region
    _
  $region21: #{_lambda_.6} parent=0 // pred_fallthru
    _
  // Predicated region
  $region22: #{_lambda_.6} parent=0 // pred_check
    _
  $region23: #{_lambda_.6} parent=0 // pred_check_branch
    %327 = sbr.rel (0) target = $region25
  $region24: #{_lambda_.6} parent=0 // pred_region
    _
  $region25: #{_lambda_.6} parent=0 // pred_fallthru
    _

// kernel: _lambda_.9
$region0: #{_lambda_.9}
  #allocation0 [shape = 'u32[]', space=smem, size = 0x4, offset = 0x4, fixed_abs, tag = 'smem constant byte address 0x4 - core index']
  #allocation1 [shape = 'u32[144,128]{1,0:T(1,128)}', space=vmem, size = 0x12000, scoped, tag = 'internal scratch']
  %s0 = inlined_call_operand.vmem [shape: f32[128,128], index: 0, kind: input, shape index: {}]
  %s1 = inlined_call_operand.vmem [shape: f32[8,128], index: 1, kind: input, shape index: {}]
  %s2 = inlined_call_operand.vmem [shape: f32[8,128], index: 2, kind: input, shape index: {}]
  %s3 = inlined_call_operand.vmem [shape: f32[128,128], index: 3, kind: output, shape index: {}]
  %s4 = sld [smem:[#allocation0]]
  $region22: #{_lambda_.9} parent=0
    _
  %s6 = ssub.s32 1, %s4
  %s7 = scalar_select 0, %s6, %s4
  // Predicated region
  $region2: #{_lambda_.9} parent=0 // pred_check
    _
  $region3: #{_lambda_.9} parent=0 // pred_check_branch
    %9 = sbr.rel (0) target = $region5
  $region4: #{_lambda_.9} parent=0 // pred_region
    _
  $region5: #{_lambda_.9} parent=0 // pred_fallthru
    _
  // Predicated region
  $region6: #{_lambda_.9} parent=0 // pred_check
    _
  $region7: #{_lambda_.9} parent=0 // pred_check_branch
    %11 = sbr.rel (0) target = $region9
  $region8: #{_lambda_.9} parent=0 // pred_region
    _
  $region9: #{_lambda_.9} parent=0 // pred_fallthru
    _
  // Predicated region
  $region10: #{_lambda_.9} parent=0 // pred_check
    _
  $region11: #{_lambda_.9} parent=0 // pred_check_branch
    %13 = sbr.rel (0) target = $region13
  $region12: #{_lambda_.9} parent=0 // pred_region
    _
  $region13: #{_lambda_.9} parent=0 // pred_fallthru
    _
  %v14 = vld [vmem:[%s0] sm:$0xff]
  %v15 = vld [vmem:[%s0 + $0x8] sm:$0xff]
  %v16 = vld [vmem:[%s0 + $0x10] sm:$0xff]
  %v17 = vld [vmem:[%s0 + $0x18] sm:$0xff]
  %v18 = vld [vmem:[%s0 + $0x20] sm:$0xff]
  %v19 = vld [vmem:[%s0 + $0x28] sm:$0xff]
  %v20 = vld [vmem:[%s0 + $0x30] sm:$0xff]
  %v21 = vld [vmem:[%s0 + $0x38] sm:$0xff]
  %v22 = vld [vmem:[%s0 + $0x40] sm:$0xff]
  %v23 = vld [vmem:[%s0 + $0x48] sm:$0xff]
  %v24 = vld [vmem:[%s0 + $0x50] sm:$0xff]
  %v25 = vld [vmem:[%s0 + $0x58] sm:$0xff]
  %v26 = vld [vmem:[%s0 + $0x60] sm:$0xff]
  %v27 = vld [vmem:[%s0 + $0x68] sm:$0xff]
  %v28 = vld [vmem:[%s0 + $0x70] sm:$0xff]
  %v29 = vld [vmem:[%s0 + $0x78] sm:$0xff]
  %v30 = vld [vmem:[%s1] sm:$0x1]
  %v31 = vlaneseq
  %v32 = vshrl.u32 %v31, 7
  %v33 = vsub.s32 0, %v32
  %v34 = vrot.slane %v30, %v33
  %v35 = vmul.f32 %v14, %v34
  %v36 = vmul.f32 %v15, %v34
  %v37 = vmul.f32 %v16, %v34
  %v38 = vmul.f32 %v17, %v34
  %v39 = vmul.f32 %v18, %v34
  %v40 = vmul.f32 %v19, %v34
  %v41 = vmul.f32 %v20, %v34
  %v42 = vmul.f32 %v21, %v34
  %v43 = vmul.f32 %v22, %v34
  %v44 = vmul.f32 %v23, %v34
  %v45 = vmul.f32 %v24, %v34
  %v46 = vmul.f32 %v25, %v34
  %v47 = vmul.f32 %v26, %v34
  %v48 = vmul.f32 %v27, %v34
  %v49 = vmul.f32 %v28, %v34
  %v50 = vmul.f32 %v29, %v34
  %v51 = vld [vmem:[%s2] sm:$0x1]
  %v52 = vlaneseq
  %v53 = vshrl.u32 %v52, 7
  %v54 = vsub.s32 0, %v53
  %v55 = vrot.slane %v51, %v54
  %v56 = vadd.f32 %v35, %v55
  %v57 = vadd.f32 %v36, %v55
  %v58 = vadd.f32 %v37, %v55
  %v59 = vadd.f32 %v38, %v55
  %v60 = vadd.f32 %v39, %v55
  %v61 = vadd.f32 %v40, %v55
  %v62 = vadd.f32 %v41, %v55
  %v63 = vadd.f32 %v42, %v55
  %v64 = vadd.f32 %v43, %v55
  %v65 = vadd.f32 %v44, %v55
  %v66 = vadd.f32 %v45, %v55
  %v67 = vadd.f32 %v46, %v55
  %v68 = vadd.f32 %v47, %v55
  %v69 = vadd.f32 %v48, %v55
  %v70 = vadd.f32 %v49, %v55
  %v71 = vadd.f32 %v50, %v55
  %72 = vst [vmem:[%s3] sm:$0xff] %v56
  %73 = vst [vmem:[%s3 + $0x8] sm:$0xff] %v57
  %74 = vst [vmem:[%s3 + $0x10] sm:$0xff] %v58
  %75 = vst [vmem:[%s3 + $0x18] sm:$0xff] %v59
  %76 = vst [vmem:[%s3 + $0x20] sm:$0xff] %v60
  %77 = vst [vmem:[%s3 + $0x28] sm:$0xff] %v61
  %78 = vst [vmem:[%s3 + $0x30] sm:$0xff] %v62
  %79 = vst [vmem:[%s3 + $0x38] sm:$0xff] %v63
  %80 = vst [vmem:[%s3 + $0x40] sm:$0xff] %v64
  %81 = vst [vmem:[%s3 + $0x48] sm:$0xff] %v65
  %82 = vst [vmem:[%s3 + $0x50] sm:$0xff] %v66
  %83 = vst [vmem:[%s3 + $0x58] sm:$0xff] %v67
  %84 = vst [vmem:[%s3 + $0x60] sm:$0xff] %v68
  %85 = vst [vmem:[%s3 + $0x68] sm:$0xff] %v69
  %86 = vst [vmem:[%s3 + $0x70] sm:$0xff] %v70
  %87 = vst [vmem:[%s3 + $0x78] sm:$0xff] %v71
  // Predicated region
  $region14: #{_lambda_.9} parent=0 // pred_check
    _
  $region15: #{_lambda_.9} parent=0 // pred_check_branch
    %89 = sbr.rel (0) target = $region17
  $region16: #{_lambda_.9} parent=0 // pred_region
    _
  $region17: #{_lambda_.9} parent=0 // pred_fallthru
    _
  // Predicated region
  $region18: #{_lambda_.9} parent=0 // pred_check
    _
  $region19: #{_lambda_.9} parent=0 // pred_check_branch
    %91 = sbr.rel (0) target = $region21
  $region20: #{_lambda_.9} parent=0 // pred_region
    _
  $region21: #{_lambda_.9} parent=0 // pred_fallthru
    _

// kernel: _lambda_.11
$region0: #{_lambda_.11}
  #allocation0 [shape = 'u32[]', space=smem, size = 0x4, offset = 0x4, fixed_abs, tag = 'smem constant byte address 0x4 - core index']
  #allocation1 [shape = 'u32[144,128]{1,0:T(1,128)}', space=vmem, size = 0x12000, scoped, tag = 'internal scratch']
  %s0 = inlined_call_operand.vmem [shape: f32[128,128], index: 0, kind: input, shape index: {}]
  %s1 = inlined_call_operand.vmem [shape: f32[8,128], index: 1, kind: input, shape index: {}]
  %s2 = inlined_call_operand.vmem [shape: f32[8,128], index: 2, kind: input, shape index: {}]
  %s3 = inlined_call_operand.vmem [shape: f32[128,128], index: 3, kind: input, shape index: {}]
  %s4 = inlined_call_operand.vmem [shape: f32[128,128], index: 4, kind: output, shape index: {}]
  %s5 = sld [smem:[#allocation0]]
  $region26: #{_lambda_.11} parent=0
    _
  %s7 = ssub.s32 1, %s5
  %s8 = scalar_select 0, %s7, %s5
  // Predicated region
  $region2: #{_lambda_.11} parent=0 // pred_check
    _
  $region3: #{_lambda_.11} parent=0 // pred_check_branch
    %10 = sbr.rel (0) target = $region5
  $region4: #{_lambda_.11} parent=0 // pred_region
    _
  $region5: #{_lambda_.11} parent=0 // pred_fallthru
    _
  // Predicated region
  $region6: #{_lambda_.11} parent=0 // pred_check
    _
  $region7: #{_lambda_.11} parent=0 // pred_check_branch
    %12 = sbr.rel (0) target = $region9
  $region8: #{_lambda_.11} parent=0 // pred_region
    _
  $region9: #{_lambda_.11} parent=0 // pred_fallthru
    _
  // Predicated region
  $region10: #{_lambda_.11} parent=0 // pred_check
    _
  $region11: #{_lambda_.11} parent=0 // pred_check_branch
    %14 = sbr.rel (0) target = $region13
  $region12: #{_lambda_.11} parent=0 // pred_region
    _
  $region13: #{_lambda_.11} parent=0 // pred_fallthru
    _
  // Predicated region
  $region14: #{_lambda_.11} parent=0 // pred_check
    _
  $region15: #{_lambda_.11} parent=0 // pred_check_branch
    %16 = sbr.rel (0) target = $region17
  $region16: #{_lambda_.11} parent=0 // pred_region
    _
  $region17: #{_lambda_.11} parent=0 // pred_fallthru
    _
  %v17 = vld [vmem:[%s0] sm:$0xff]
  %v18 = vld [vmem:[%s0 + $0x8] sm:$0xff]
  %v19 = vld [vmem:[%s0 + $0x10] sm:$0xff]
  %v20 = vld [vmem:[%s0 + $0x18] sm:$0xff]
  %v21 = vld [vmem:[%s0 + $0x20] sm:$0xff]
  %v22 = vld [vmem:[%s0 + $0x28] sm:$0xff]
  %v23 = vld [vmem:[%s0 + $0x30] sm:$0xff]
  %v24 = vld [vmem:[%s0 + $0x38] sm:$0xff]
  %v25 = vld [vmem:[%s0 + $0x40] sm:$0xff]
  %v26 = vld [vmem:[%s0 + $0x48] sm:$0xff]
  %v27 = vld [vmem:[%s0 + $0x50] sm:$0xff]
  %v28 = vld [vmem:[%s0 + $0x58] sm:$0xff]
  %v29 = vld [vmem:[%s0 + $0x60] sm:$0xff]
  %v30 = vld [vmem:[%s0 + $0x68] sm:$0xff]
  %v31 = vld [vmem:[%s0 + $0x70] sm:$0xff]
  %v32 = vld [vmem:[%s0 + $0x78] sm:$0xff]
  %v33 = vld [vmem:[%s1] sm:$0x1]
  %v34 = vlaneseq
  %v35 = vshrl.u32 %v34, 7
  %v36 = vsub.s32 0, %v35
  %v37 = vrot.slane %v33, %v36
  %v38 = vmul.f32 %v17, %v37
  %v39 = vmul.f32 %v18, %v37
  %v40 = vmul.f32 %v19, %v37
  %v41 = vmul.f32 %v20, %v37
  %v42 = vmul.f32 %v21, %v37
  %v43 = vmul.f32 %v22, %v37
  %v44 = vmul.f32 %v23, %v37
  %v45 = vmul.f32 %v24, %v37
  %v46 = vmul.f32 %v25, %v37
  %v47 = vmul.f32 %v26, %v37
  %v48 = vmul.f32 %v27, %v37
  %v49 = vmul.f32 %v28, %v37
  %v50 = vmul.f32 %v29, %v37
  %v51 = vmul.f32 %v30, %v37
  %v52 = vmul.f32 %v31, %v37
  %v53 = vmul.f32 %v32, %v37
  %v54 = vld [vmem:[%s2] sm:$0x1]
  %v55 = vlaneseq
  %v56 = vshrl.u32 %v55, 7
  %v57 = vsub.s32 0, %v56
  %v58 = vrot.slane %v54, %v57
  %v59 = vadd.f32 %v38, %v58
  %v60 = vadd.f32 %v39, %v58
  %v61 = vadd.f32 %v40, %v58
  %v62 = vadd.f32 %v41, %v58
  %v63 = vadd.f32 %v42, %v58
  %v64 = vadd.f32 %v43, %v58
  %v65 = vadd.f32 %v44, %v58
  %v66 = vadd.f32 %v45, %v58
  %v67 = vadd.f32 %v46, %v58
  %v68 = vadd.f32 %v47, %v58
  %v69 = vadd.f32 %v48, %v58
  %v70 = vadd.f32 %v49, %v58
  %v71 = vadd.f32 %v50, %v58
  %v72 = vadd.f32 %v51, %v58
  %v73 = vadd.f32 %v52, %v58
  %v74 = vadd.f32 %v53, %v58
  %v75 = vld [vmem:[%s3] sm:$0xff]
  %v76 = vld [vmem:[%s3 + $0x8] sm:$0xff]
  %v77 = vld [vmem:[%s3 + $0x10] sm:$0xff]
  %v78 = vld [vmem:[%s3 + $0x18] sm:$0xff]
  %v79 = vld [vmem:[%s3 + $0x20] sm:$0xff]
  %v80 = vld [vmem:[%s3 + $0x28] sm:$0xff]
  %v81 = vld [vmem:[%s3 + $0x30] sm:$0xff]
  %v82 = vld [vmem:[%s3 + $0x38] sm:$0xff]
  %v83 = vld [vmem:[%s3 + $0x40] sm:$0xff]
  %v84 = vld [vmem:[%s3 + $0x48] sm:$0xff]
  %v85 = vld [vmem:[%s3 + $0x50] sm:$0xff]
  %v86 = vld [vmem:[%s3 + $0x58] sm:$0xff]
  %v87 = vld [vmem:[%s3 + $0x60] sm:$0xff]
  %v88 = vld [vmem:[%s3 + $0x68] sm:$0xff]
  %v89 = vld [vmem:[%s3 + $0x70] sm:$0xff]
  %v90 = vld [vmem:[%s3 + $0x78] sm:$0xff]
  %v91 = vadd.f32 %v59, %v75
  %v92 = vadd.f32 %v60, %v76
  %v93 = vadd.f32 %v61, %v77
  %v94 = vadd.f32 %v62, %v78
  %v95 = vadd.f32 %v63, %v79
  %v96 = vadd.f32 %v64, %v80
  %v97 = vadd.f32 %v65, %v81
  %v98 = vadd.f32 %v66, %v82
  %v99 = vadd.f32 %v67, %v83
  %v100 = vadd.f32 %v68, %v84
  %v101 = vadd.f32 %v69, %v85
  %v102 = vadd.f32 %v70, %v86
  %v103 = vadd.f32 %v71, %v87
  %v104 = vadd.f32 %v72, %v88
  %v105 = vadd.f32 %v73, %v89
  %v106 = vadd.f32 %v74, %v90
  %v107 = vmax.f32 %v91, 0.0
  %v108 = vmax.f32 %v92, 0.0
  %v109 = vmax.f32 %v93, 0.0
  %v110 = vmax.f32 %v94, 0.0
  %v111 = vmax.f32 %v95, 0.0
  %v112 = vmax.f32 %v96, 0.0
  %v113 = vmax.f32 %v97, 0.0
  %v114 = vmax.f32 %v98, 0.0
  %v115 = vmax.f32 %v99, 0.0
  %v116 = vmax.f32 %v100, 0.0
  %v117 = vmax.f32 %v101, 0.0
  %v118 = vmax.f32 %v102, 0.0
  %v119 = vmax.f32 %v103, 0.0
  %v120 = vmax.f32 %v104, 0.0
  %v121 = vmax.f32 %v105, 0.0
  %v122 = vmax.f32 %v106, 0.0
  %123 = vst [vmem:[%s4] sm:$0xff] %v107
  %124 = vst [vmem:[%s4 + $0x8] sm:$0xff] %v108
  %125 = vst [vmem:[%s4 + $0x10] sm:$0xff] %v109
  %126 = vst [vmem:[%s4 + $0x18] sm:$0xff] %v110
  %127 = vst [vmem:[%s4 + $0x20] sm:$0xff] %v111
  %128 = vst [vmem:[%s4 + $0x28] sm:$0xff] %v112
  %129 = vst [vmem:[%s4 + $0x30] sm:$0xff] %v113
  %130 = vst [vmem:[%s4 + $0x38] sm:$0xff] %v114
  %131 = vst [vmem:[%s4 + $0x40] sm:$0xff] %v115
  %132 = vst [vmem:[%s4 + $0x48] sm:$0xff] %v116
  %133 = vst [vmem:[%s4 + $0x50] sm:$0xff] %v117
  %134 = vst [vmem:[%s4 + $0x58] sm:$0xff] %v118
  %135 = vst [vmem:[%s4 + $0x60] sm:$0xff] %v119
  %136 = vst [vmem:[%s4 + $0x68] sm:$0xff] %v120
  %137 = vst [vmem:[%s4 + $0x70] sm:$0xff] %v121
  %138 = vst [vmem:[%s4 + $0x78] sm:$0xff] %v122
  // Predicated region
  $region18: #{_lambda_.11} parent=0 // pred_check
    _
  $region19: #{_lambda_.11} parent=0 // pred_check_branch
    %140 = sbr.rel (0) target = $region21
  $region20: #{_lambda_.11} parent=0 // pred_region
    _
  $region21: #{_lambda_.11} parent=0 // pred_fallthru
    _
  // Predicated region
  $region22: #{_lambda_.11} parent=0 // pred_check
    _
  $region23: #{_lambda_.11} parent=0 // pred_check_branch
    %142 = sbr.rel (0) target = $region25
  $region24: #{_lambda_.11} parent=0 // pred_region
    _
  $region25: #{_lambda_.11} parent=0 // pred_fallthru
    _

</llo_original>
